<compile_context>
chip_gen: v7x
topology: tpu7x:2x2x1
jax: 0.10.0
libtpu: 0.0.40
codegen_flags: <defaults>
</compile_context>

<pallas_src>
import functools

import jax
import jax.numpy as jnp
from jax.experimental import pallas as pl
from jax.experimental.pallas import tpu as pltpu


def _cdiv(a, b):
    return -(-a // b)


def _round_up(n, m):
    return _cdiv(n, m) * m


def _rbf_ffn_kernel(x_ref, ct_ref, csq_ref, wt_ref, b_ref, o_ref, acc_ref,
                    *, inv_two_sigma_sq):
    # x_ref:   (TM, D)   token tile (ragged last block: OOB rows hold garbage,
    #                    but every output row depends only on its own input
    #                    row and OOB stores are masked by Pallas).
    # ct_ref:  (D, TK)   centers^T * (1/sigma^2)
    # csq_ref: (1, TK)   |c|^2 * (1/(2*sigma^2)), f32
    # wt_ref:  (TK, D)   linear_out.weight^T
    # b_ref:   (1, D)    linear_out.bias, f32
    # o_ref:   (TM, D)   output tile (written on the last K step)
    # acc_ref: (TM, D)   f32 accumulator, resident across the K axis
    j = pl.program_id(1)

    @pl.when(j == 0)
    def _():
        acc_ref[...] = jnp.zeros_like(acc_ref)

    x = x_ref[...]

    # x . c^T on the MXU, f32 accumulation (operands stay in native dtype).
    xc = jnp.dot(x, ct_ref[...], preferred_element_type=jnp.float32)  # (TM,TK)

    # Per-row |x|^2 / (2*sigma^2) in f32 (avoids low-precision cancellation).
    xf = x.astype(jnp.float32)
    x_sq = jnp.sum(xf * xf, axis=-1, keepdims=True) * inv_two_sigma_sq  # (TM,1)

    # arg = -dist_sq / (2*sigma^2); clamp at 0 so fp cancellation near x ~= c
    # cannot produce exp(positive) > 1.
    arg = jnp.minimum(xc - x_sq - csq_ref[...], 0.0)
    rbf = jnp.exp(arg)                                    # EUP exp, f32

    # Partial output projection on the MXU, accumulated in f32.
    acc_ref[...] += jnp.dot(rbf.astype(wt_ref.dtype), wt_ref[...],
                            preferred_element_type=jnp.float32)

    @pl.when(j == pl.num_programs(1) - 1)
    def _():
        o_ref[...] = (acc_ref[...] + b_ref[...]).astype(o_ref.dtype)


def _choose_tiles(N, D, K, x_itemsize, p_itemsize, budget_bytes):
    """Deterministic (tm, tk) selection from an explicit VMEM byte budget."""
    # K tile: bound the per-step resident centers^T + W^T footprint
    # (2 operands, double-buffered) to ~1/4 of the budget.
    param_budget = budget_bytes // 4
    tk = K
    if 4 * D * K * p_itemsize > param_budget:
        cap = max((param_budget // (4 * D * p_itemsize)) // 128 * 128, 128)
        for cand in range(min(cap, (K // 128) * 128), 127, -128):
            if K % cand == 0:
                tk = cand
                break
    # Token tile: per token row we roughly hold the x + out tiles
    # (double-buffered), the f32 accumulator row, and the f32 (TM, TK)
    # intermediates (xc / arg / rbf).
    per_row = 4 * D * x_itemsize + 4 * D + 3 * 4 * tk
    rem = budget_bytes - 4 * D * tk * p_itemsize
    tm = max(8, min(4096, (rem // max(per_row, 1)) // 8 * 8))
    return tm, tk


def prepare_rbf_ffn_params(centers, w_out, b_out, sigma=1.0):
    """One-time parameter preprocessing (hoisted out of the per-call path)."""
    sigma = float(sigma)
    inv_sigma_sq = 1.0 / (sigma * sigma)
    inv_two_sigma_sq = 0.5 * inv_sigma_sq
    centers_t = (centers * inv_sigma_sq).T                         # (D, K)
    c_sq = (jnp.sum(centers.astype(jnp.float32) ** 2, axis=-1)
            * inv_two_sigma_sq)[None, :]                           # (1, K) f32
    w_t = w_out.T                                                  # (K, D)
    b2d = b_out.astype(jnp.float32)[None, :]                       # (1, D) f32
    return dict(centers_t=centers_t, c_sq=c_sq, w_t=w_t, b2d=b2d,
                inv_two_sigma_sq=inv_two_sigma_sq)


def rbf_kernel_ffn_apply(x, params, *, vmem_budget_bytes=24 << 20):
    """x: (B, L, D); params from prepare_rbf_ffn_params."""
    B, L, D = x.shape
    centers_t = params["centers_t"]
    c_sq = params["c_sq"]
    w_t = params["w_t"]
    b2d = params["b2d"]
    inv_two_sigma_sq = params["inv_two_sigma_sq"]
    K = centers_t.shape[1]
    N = B * L
    x2d = x.reshape(N, D)                      # no padding, no extra HBM copy

    x_item = jnp.dtype(x.dtype).itemsize
    p_item = jnp.dtype(centers_t.dtype).itemsize
    tm, tk = _choose_tiles(N, D, K, x_item, p_item, vmem_budget_bytes)
    tm = min(tm, _round_up(N, 8))
    # Keep >= 2 token blocks (when there is enough work) so the "parallel"
    # axis can be sharded across both TensorCores on v7x megacore.
    if N > 8 and _cdiv(N, tm) < 2:
        tm = _round_up(_cdiv(N, 2), 8)
    grid = (_cdiv(N, tm), K // tk)

    # Explicit VMEM accounting -> scoped limit (capped well under v7x 64 MiB).
    per_row = 4 * D * x_item + 4 * D + 3 * 4 * tk
    est = 4 * D * tk * p_item + tm * per_row + (1 << 20)
    vmem_limit = int(min(48 << 20, max(2 * est, 24 << 20)))

    cost = pl.CostEstimate(
        flops=4 * N * K * D,                   # two matmuls, 2*N*K*D each
        transcendentals=N * K,                 # exp
        bytes_accessed=(2 * N * D * x_item + 2 * D * K * p_item
                        + 4 * K + 4 * D),
    )

    kernel = functools.partial(_rbf_ffn_kernel,
                               inv_two_sigma_sq=inv_two_sigma_sq)

    out2d = pl.pallas_call(
        kernel,
        out_shape=jax.ShapeDtypeStruct((N, D), x.dtype),
        grid_spec=pltpu.PrefetchScalarGridSpec(
            num_scalar_prefetch=0,
            grid=grid,
            in_specs=[
                pl.BlockSpec((tm, D), lambda i, j: (i, 0)),    # x tile
                pl.BlockSpec((D, tk), lambda i, j: (0, j)),    # centers^T (scaled)
                pl.BlockSpec((1, tk), lambda i, j: (0, j)),    # |c|^2 (scaled)
                pl.BlockSpec((tk, D), lambda i, j: (j, 0)),    # W^T
                pl.BlockSpec((1, D), lambda i, j: (0, 0)),     # bias
            ],
            out_specs=pl.BlockSpec((tm, D), lambda i, j: (i, 0)),
            scratch_shapes=[pltpu.VMEM((tm, D), jnp.float32)],
        ),
        compiler_params=pltpu.CompilerParams(
            dimension_semantics=("parallel", "arbitrary"),
            vmem_limit_bytes=vmem_limit),
        cost_estimate=cost,
    )(x2d, centers_t, c_sq, w_t, b2d)

    return out2d.reshape(B, L, D)


def rbf_kernel_ffn(x, centers, w_out, b_out, sigma=1.0, **kwargs):
    """Convenience one-shot wrapper (prepare + apply)."""
    return rbf_kernel_ffn_apply(
        x, prepare_rbf_ffn_params(centers, w_out, b_out, sigma), **kwargs)


def rbf_kernel_ffn_ref(x, centers, w_out, b_out, sigma=1.0):
    """Pure-JAX reference, mirrors the PyTorch forward exactly."""
    diff = x[:, :, None, :] - centers[None, None, :, :]
    dist_sq = jnp.sum(diff ** 2, axis=-1)
    rbf = jnp.exp(-dist_sq / (2.0 * sigma ** 2))
    return rbf @ w_out.T + b_out


if __name__ == "__main__":
    # Config consistent with the module: emb_dim=32 -> num_kernels=128
    B, L, D = 2, 8, 32
    K = 4 * D
    sigma = 1.0

    key = jax.random.PRNGKey(0)
    kx, kc, kw, kb = jax.random.split(key, 4)

    x = jax.random.normal(kx, (B, L, D), dtype=jnp.float32)

    # Deterministic parameter init (same distributions as the PyTorch module):
    # centers ~ N(0,1)*0.1 ; Linear(K->D): U(-1/sqrt(K), 1/sqrt(K))
    centers = jax.random.normal(kc, (K, D), dtype=jnp.float32) * 0.1
    bound = 1.0 / (K ** 0.5)
    w_out = jax.random.uniform(kw, (D, K), minval=-bound, maxval=bound,
                               dtype=jnp.float32)
    b_out = jax.random.uniform(kb, (D,), minval=-bound, maxval=bound,
                               dtype=jnp.float32)

    # Prepare params once (hoisted preprocessing), then run the kernel.
    params = prepare_rbf_ffn_params(centers, w_out, b_out, sigma)
    out = rbf_kernel_ffn_apply(x, params)
    out = jax.block_until_ready(out)

    ref = rbf_kernel_ffn_ref(x, centers, w_out, b_out, sigma)
    assert out.shape == (B, L, D)
    assert jnp.allclose(out, ref, atol=1e-4, rtol=1e-4), "mismatch vs reference"

    print("KERNEL_OK")
</pallas_src>

<mosaic_0001>
module attributes {stable_mosaic.version = 11 : i64} {
  func.func @_rbf_ffn_kernel(%arg0: i32, %arg1: i32, %arg2: memref<8x32xf32, #tpu.memory_space<vmem>>, %arg3: memref<32x128xf32, #tpu.memory_space<vmem>>, %arg4: memref<1x128xf32, #tpu.memory_space<vmem>>, %arg5: memref<128x32xf32, #tpu.memory_space<vmem>>, %arg6: memref<1x32xf32, #tpu.memory_space<vmem>>, %arg7: memref<8x32xf32, #tpu.memory_space<vmem>>, %arg8: memref<8x32xf32, #tpu.memory_space<vmem>>) attributes {dimension_semantics = [#tpu.dimension_semantics<parallel>, #tpu.dimension_semantics<arbitrary>], iteration_bounds = array<i64: 2, 1>, scalar_prefetch = 0 : i64, scratch_operands = 1 : i64, tpu.core_type = #tpu.core_type<tc>, window_params = [{transform_indices = @transform_0, window_bounds = array<i64: 8, 32>}, {transform_indices = @transform_1, window_bounds = array<i64: 32, 128>}, {transform_indices = @transform_2, window_bounds = array<i64: 1, 128>}, {transform_indices = @transform_3, window_bounds = array<i64: 128, 32>}, {pipeline_mode = #tpu.pipeline_mode<synchronous>, transform_indices = @transform_4, window_bounds = array<i64: 1, 32>}, {transform_indices = @transform_5, window_bounds = array<i64: 8, 32>}]} {
    %c0_i32 = arith.constant 0 : i32
    %0 = arith.cmpi eq, %arg1, %c0_i32 : i32
    %1 = arith.extui %0 : i1 to i32
    %c0_i32_0 = arith.constant 0 : i32
    %2 = arith.cmpi ne, %1, %c0_i32_0 : i32
    scf.if %2 {
      %cst_18 = arith.constant 0.000000e+00 : f32
      %27 = vector.broadcast %cst_18 : f32 to vector<8x32xf32>
      %c0_19 = arith.constant 0 : index
      %c0_20 = arith.constant 0 : index
      %28 = vector.load %arg8[%c0_19, %c0_20] : memref<8x32xf32, #tpu.memory_space<vmem>>, vector<8x32xf32>
      tpu.vector_store %arg8[%c0_19, %c0_20], %27 {strides = array<i32>} : memref<8x32xf32, #tpu.memory_space<vmem>>, vector<8x32xf32>,
    } else {
    }
    %c0 = arith.constant 0 : index
    %c0_1 = arith.constant 0 : index
    %3 = vector.load %arg2[%c0, %c0_1] : memref<8x32xf32, #tpu.memory_space<vmem>>, vector<8x32xf32>
    %c0_2 = arith.constant 0 : index
    %c0_3 = arith.constant 0 : index
    %4 = vector.load %arg3[%c0_2, %c0_3] : memref<32x128xf32, #tpu.memory_space<vmem>>, vector<32x128xf32>
    %cst = arith.constant dense<0.000000e+00> : vector<8x128xf32>
    %5 = tpu.matmul %3, %4, %cst {dimension_numbers = #tpu.dot_dimension_numbers<[1], [0], [0], [1], [0, 0, 1, 1], [], []>} : vector<8x32xf32>, vector<32x128xf32>, vector<8x128xf32> -> vector<8x128xf32>
    %6 = arith.mulf %3, %3 : vector<8x32xf32>
    %cst_4 = arith.constant dense<0.000000e+00> : vector<8xf32>
    %7 = vector.multi_reduction <add>, %6, %cst_4 [1] : vector<8x32xf32> to vector<8xf32>
    %8 = vector.shape_cast %7 : vector<8xf32> to vector<8x1xf32>
    %cst_5 = arith.constant 5.000000e-01 : f32
    %9 = vector.broadcast %cst_5 : f32 to vector<8x1xf32>
    %10 = arith.mulf %8, %9 : vector<8x1xf32>
    %11 = vector.broadcast %10 : vector<8x1xf32> to vector<8x128xf32>
    %12 = arith.subf %5, %11 : vector<8x128xf32>
    %c0_6 = arith.constant 0 : index
    %c0_7 = arith.constant 0 : index
    %13 = vector.load %arg4[%c0_6, %c0_7] : memref<1x128xf32, #tpu.memory_space<vmem>>, vector<1x128xf32>
    %14 = vector.broadcast %13 : vector<1x128xf32> to vector<8x128xf32>
    %15 = arith.subf %12, %14 : vector<8x128xf32>
    %cst_8 = arith.constant 0.000000e+00 : f32
    %16 = vector.broadcast %cst_8 : f32 to vector<8x128xf32>
    %17 = arith.minimumf %15, %16 : vector<8x128xf32>
    %18 = math.exp %17 : vector<8x128xf32>
    %c0_9 = arith.constant 0 : index
    %c0_10 = arith.constant 0 : index
    %19 = vector.load %arg8[%c0_9, %c0_10] : memref<8x32xf32, #tpu.memory_space<vmem>>, vector<8x32xf32>
    %c0_11 = arith.constant 0 : index
    %c0_12 = arith.constant 0 : index
    %20 = vector.load %arg5[%c0_11, %c0_12] : memref<128x32xf32, #tpu.memory_space<vmem>>, vector<128x32xf32>
    %cst_13 = arith.constant dense<0.000000e+00> : vector<8x32xf32>
    %21 = tpu.matmul %18, %20, %cst_13 {dimension_numbers = #tpu.dot_dimension_numbers<[1], [0], [0], [1], [0, 0, 1, 1], [], []>} : vector<8x128xf32>, vector<128x32xf32>, vector<8x32xf32> -> vector<8x32xf32>
    %22 = arith.addf %19, %21 : vector<8x32xf32>
    %c0_14 = arith.constant 0 : index
    %c0_15 = arith.constant 0 : index
    %23 = vector.load %arg8[%c0_14, %c0_15] : memref<8x32xf32, #tpu.memory_space<vmem>>, vector<8x32xf32>
    tpu.vector_store %arg8[%c0_14, %c0_15], %22 {strides = array<i32>} : memref<8x32xf32, #tpu.memory_space<vmem>>, vector<8x32xf32>,
    %c0_i32_16 = arith.constant 0 : i32
    %24 = arith.cmpi eq, %arg1, %c0_i32_16 : i32
    %25 = arith.extui %24 : i1 to i32
    %c0_i32_17 = arith.constant 0 : i32
    %26 = arith.cmpi ne, %25, %c0_i32_17 : i32
    scf.if %26 {
      %c0_18 = arith.constant 0 : index
      %c0_19 = arith.constant 0 : index
      %27 = vector.load %arg8[%c0_18, %c0_19] : memref<8x32xf32, #tpu.memory_space<vmem>>, vector<8x32xf32>
      %c0_20 = arith.constant 0 : index
      %c0_21 = arith.constant 0 : index
      %28 = vector.load %arg6[%c0_20, %c0_21] : memref<1x32xf32, #tpu.memory_space<vmem>>, vector<1x32xf32>
      %29 = vector.broadcast %28 : vector<1x32xf32> to vector<8x32xf32>
      %30 = arith.addf %27, %29 : vector<8x32xf32>
      %c0_22 = arith.constant 0 : index
      %c0_23 = arith.constant 0 : index
      %31 = vector.load %arg7[%c0_22, %c0_23] : memref<8x32xf32, #tpu.memory_space<vmem>>, vector<8x32xf32>
      tpu.vector_store %arg7[%c0_22, %c0_23], %30 {strides = array<i32>} : memref<8x32xf32, #tpu.memory_space<vmem>>, vector<8x32xf32>,
    } else {
    }
    return
  }
  func.func @transform_0(%arg0: i32, %arg1: i32) -> (i32, i32) {
    %c0_i32 = arith.constant 0 : i32
    %c0_i32_0 = arith.constant 0 : i32
    return %arg0, %c0_i32 : i32, i32
  }
  func.func @transform_1(%arg0: i32, %arg1: i32) -> (i32, i32) {
    %c0_i32 = arith.constant 0 : i32
    %c0_i32_0 = arith.constant 0 : i32
    return %c0_i32, %arg1 : i32, i32
  }
  func.func @transform_2(%arg0: i32, %arg1: i32) -> (i32, i32) {
    %c0_i32 = arith.constant 0 : i32
    %c0_i32_0 = arith.constant 0 : i32
    return %c0_i32, %arg1 : i32, i32
  }
  func.func @transform_3(%arg0: i32, %arg1: i32) -> (i32, i32) {
    %c0_i32 = arith.constant 0 : i32
    %c0_i32_0 = arith.constant 0 : i32
    return %arg1, %c0_i32 : i32, i32
  }
  func.func @transform_4(%arg0: i32, %arg1: i32) -> (i32, i32) {
    %c0_i32 = arith.constant 0 : i32
    %c0_i32_0 = arith.constant 0 : i32
    %c0_i32_1 = arith.constant 0 : i32
    return %c0_i32, %c0_i32_0 : i32, i32
  }
  func.func @transform_5(%arg0: i32, %arg1: i32) -> (i32, i32) {
    %c0_i32 = arith.constant 0 : i32
    %c0_i32_0 = arith.constant 0 : i32
    return %arg0, %c0_i32 : i32, i32
  }
}

</mosaic_0001>

<llo_original>
// kernel: tpu_custom_call.1
$region0: #{tpu_custom_call.1}
  #allocation0 [shape = 'u32[]', space=smem, size = 0x4, offset = 0x4, fixed_abs, tag = 'smem constant byte address 0x4 - core index']
  #allocation1 [shape = 'u32[144,128]{1,0:T(1,128)}', space=vmem, size = 0x12000, scoped, tag = 'internal scratch']
  #allocation2 [shape = 'f32[8,32]{1,0:T(8,128)}', space=vmem, size = 0x1000, scoped, tag = 'scratch operand']
  %s0 = inlined_call_operand.vmem [shape: f32[16,32], index: 0, kind: input, shape index: {}]
  %s1 = inlined_call_operand.vmem [shape: f32[32,128], index: 1, kind: input, shape index: {}]
  %s2 = inlined_call_operand.vmem [shape: f32[1,128], index: 2, kind: input, shape index: {}]
  %s3 = inlined_call_operand.vmem [shape: f32[128,32], index: 3, kind: input, shape index: {}]
  %s4 = inlined_call_operand.vmem [shape: f32[1,32], index: 4, kind: input, shape index: {}]
  %s5 = inlined_call_operand.hbm [shape: f32[16,32], index: 5, kind: output, shape index: {}]
  %s6 = sld [smem:[#allocation0]]
  $region61: #{tpu_custom_call.1} parent=0
    _
  %s8 = ssub.s32 1, %s6
  %s9 = scalar_select 0, %s8, %s6
  $region1: #{tpu_custom_call.1} parent=0
    #allocation3 [shape = 'u8[8192]{0}', space=vmem, size = 0x2000, scoped, tag = 'output window, operand 0']
    #allocation4 [shape = 's32[2]{0}', space=sflag, size = 0x8, scoped, tag = 'scoped memory for tpu_custom_call.1']
    %10 = vsyncpa [#allocation4], 0
    %s11 = scalar_lea.sflag [#allocation4], 1
    %12 = vsyncpa %s11, 0
    loop: start=0, step=1, limit=4
    $region2: #{tpu_custom_call.1} parent=1 // loop_pre_header
      _
    $region3: #{tpu_custom_call.1} parent=1 // loop_header
      %s14 = sphi 0, %s18
      %p15 = scmp.ge.s32.totalorder %s14, 4
      %s21 = sphi 0, %s33
      %s22 = sphi 0, %s29
      %s23 = sphi 0, %s21
      %s24 = sphi 0, %s22
      %s25 = sphi 0, %s23
      %s26 = sphi 0, %s24
      %s36 = sphi 0, %s38
      %s39 = sphi 0, %s36
      %s40 = sphi 0, %s39
      %s56 = sphi 0, %s40
      %s62 = sphi 0, %s64
      %s65 = sphi 0, %s62
      %s66 = sphi 0, %s65
      %s82 = sphi 0, %s66
      %s88 = sphi 0, %s90
      %s91 = sphi 0, %s88
      %s92 = sphi 0, %s91
      %s108 = sphi 0, %s92
      %s114 = sphi 0, %s116
      %s117 = sphi 0, %s114
      %s118 = sphi 0, %s117
      %s134 = sphi 0, %s118
      %s138 = sphi 0, %s138
      %s140 = sphi 0, %s138
      %s141 = sphi 0, %s140
      %s155 = sphi 0, %s141
      %s161 = sphi 0, %s163
      %s164 = sphi 0, %s161
      %s165 = sphi 0, %s164
      %s181 = sphi 0, %s165
    $region4: #{tpu_custom_call.1} parent=1 // loop_header_branch
      %17 = sbr.rel (%p15) target = $region8
    $region5: #{tpu_custom_call.1} parent=1 // loop_body
      %s19 = ssub.s32 %s14, 1
      %s20 = ssub.s32 %s14, 2
      %s27 = sadd.s32 1, %s22
      %p28 = scmp.ge.s32.totalorder %s27, 1
      %s29 = scalar_select %p28, 0, %s27
      %s30 = sadd.s32 1, %s21
      %s31 = scalar_select %p28, %s30, %s21
      %p32 = scmp.ge.s32.totalorder %s31, 2
      %s33 = scalar_select %p32, 0, %s31
      %s34 = ssub.s32 %s21, %s33
      %p35 = scmp.eq.s32.totalorder %s34, 0
      %s37 = sadd.s32 %s36, 1
      %s38 = scalar_select %p35, %s36, %s37
      %p41 = pneg %p35
      %p42 = scmp.eq.s32.totalorder %s14, 1
      %p43 = por %p41, %p42
      %p44 = scmp.ne.s32.totalorder %s36, %s39
      %p45 = scmp.eq.s32.totalorder %s14, 0
      %p46 = por %p44, %p45
      %p47 = scmp.ne.s32.totalorder %s36, %s39
      %p48 = scmp.eq.s32.totalorder %s19, 1
      %p49 = por %p47, %p48
      %p50 = scmp.ne.s32.totalorder %s39, %s40
      %p51 = scmp.eq.s32.totalorder %s19, 0
      %p52 = por %p50, %p51
      %p53 = scmp.ne.s32.totalorder %s39, %s40
      %p54 = scmp.eq.s32.totalorder %s20, 1
      %p55 = por %p53, %p54
      %p57 = scmp.ne.s32.totalorder %s40, %s56
      %p58 = scmp.eq.s32.totalorder %s20, 0
      %p59 = por %p57, %p58
      %s60 = ssub.s32 %s22, %s29
      %p61 = scmp.eq.s32.totalorder %s60, 0
      %s63 = sadd.s32 %s62, 1
      %s64 = scalar_select %p61, %s62, %s63
      %p67 = pneg %p61
      %p68 = scmp.eq.s32.totalorder %s14, 1
      %p69 = por %p67, %p68
      %p70 = scmp.ne.s32.totalorder %s62, %s65
      %p71 = scmp.eq.s32.totalorder %s14, 0
      %p72 = por %p70, %p71
      %p73 = scmp.ne.s32.totalorder %s62, %s65
      %p74 = scmp.eq.s32.totalorder %s19, 1
      %p75 = por %p73, %p74
      %p76 = scmp.ne.s32.totalorder %s65, %s66
      %p77 = scmp.eq.s32.totalorder %s19, 0
      %p78 = por %p76, %p77
      %p79 = scmp.ne.s32.totalorder %s65, %s66
      %p80 = scmp.eq.s32.totalorder %s20, 1
      %p81 = por %p79, %p80
      %p83 = scmp.ne.s32.totalorder %s66, %s82
      %p84 = scmp.eq.s32.totalorder %s20, 0
      %p85 = por %p83, %p84
      %s86 = ssub.s32 %s22, %s29
      %p87 = scmp.eq.s32.totalorder %s86, 0
      %s89 = sadd.s32 %s88, 1
      %s90 = scalar_select %p87, %s88, %s89
      %p93 = pneg %p87
      %p94 = scmp.eq.s32.totalorder %s14, 1
      %p95 = por %p93, %p94
      %p96 = scmp.ne.s32.totalorder %s88, %s91
      %p97 = scmp.eq.s32.totalorder %s14, 0
      %p98 = por %p96, %p97
      %p99 = scmp.ne.s32.totalorder %s88, %s91
      %p100 = scmp.eq.s32.totalorder %s19, 1
      %p101 = por %p99, %p100
      %p102 = scmp.ne.s32.totalorder %s91, %s92
      %p103 = scmp.eq.s32.totalorder %s19, 0
      %p104 = por %p102, %p103
      %p105 = scmp.ne.s32.totalorder %s91, %s92
      %p106 = scmp.eq.s32.totalorder %s20, 1
      %p107 = por %p105, %p106
      %p109 = scmp.ne.s32.totalorder %s92, %s108
      %p110 = scmp.eq.s32.totalorder %s20, 0
      %p111 = por %p109, %p110
      %s112 = ssub.s32 %s22, %s29
      %p113 = scmp.eq.s32.totalorder %s112, 0
      %s115 = sadd.s32 %s114, 1
      %s116 = scalar_select %p113, %s114, %s115
      %p119 = pneg %p113
      %p120 = scmp.eq.s32.totalorder %s14, 1
      %p121 = por %p119, %p120
      %p122 = scmp.ne.s32.totalorder %s114, %s117
      %p123 = scmp.eq.s32.totalorder %s14, 0
      %p124 = por %p122, %p123
      %p125 = scmp.ne.s32.totalorder %s114, %s117
      %p126 = scmp.eq.s32.totalorder %s19, 1
      %p127 = por %p125, %p126
      %p128 = scmp.ne.s32.totalorder %s117, %s118
      %p129 = scmp.eq.s32.totalorder %s19, 0
      %p130 = por %p128, %p129
      %p131 = scmp.ne.s32.totalorder %s117, %s118
      %p132 = scmp.eq.s32.totalorder %s20, 1
      %p133 = por %p131, %p132
      %p135 = scmp.ne.s32.totalorder %s118, %s134
      %p136 = scmp.eq.s32.totalorder %s20, 0
      %p137 = por %p135, %p136
      %s139 = sadd.s32 %s138, 1
      %p142 = scmp.eq.s32.totalorder %s14, 1
      %p143 = scmp.ne.s32.totalorder %s138, %s140
      %p144 = scmp.eq.s32.totalorder %s14, 0
      %p145 = por %p143, %p144
      %p146 = scmp.ne.s32.totalorder %s138, %s140
      %p147 = scmp.eq.s32.totalorder %s19, 1
      %p148 = por %p146, %p147
      %p149 = scmp.ne.s32.totalorder %s140, %s141
      %p150 = scmp.eq.s32.totalorder %s19, 0
      %p151 = por %p149, %p150
      %p152 = scmp.ne.s32.totalorder %s140, %s141
      %p153 = scmp.eq.s32.totalorder %s20, 1
      %p154 = por %p152, %p153
      %p156 = scmp.ne.s32.totalorder %s141, %s155
      %p157 = scmp.eq.s32.totalorder %s20, 0
      %p158 = por %p156, %p157
      %s159 = ssub.s32 %s21, %s33
      %p160 = scmp.eq.s32.totalorder %s159, 0
      %s162 = sadd.s32 %s161, 1
      %s163 = scalar_select %p160, %s161, %s162
      %p166 = pneg %p160
      %p167 = scmp.eq.s32.totalorder %s14, 1
      %p168 = por %p166, %p167
      %p169 = scmp.ne.s32.totalorder %s161, %s164
      %p170 = scmp.eq.s32.totalorder %s14, 0
      %p171 = por %p169, %p170
      %p172 = scmp.ne.s32.totalorder %s161, %s164
      %p173 = scmp.eq.s32.totalorder %s19, 1
      %p174 = por %p172, %p173
      %p175 = scmp.ne.s32.totalorder %s164, %s165
      %p176 = scmp.eq.s32.totalorder %s19, 0
      %p177 = por %p175, %p176
      %p178 = scmp.ne.s32.totalorder %s164, %s165
      %p179 = scmp.eq.s32.totalorder %s20, 1
      %p180 = por %p178, %p179
      %p182 = scmp.ne.s32.totalorder %s165, %s181
      %p183 = scmp.eq.s32.totalorder %s20, 0
      %p184 = por %p182, %p183
      %p185 = scmp.le.s32.totalorder 1, %s14
      %p186 = scmp.lt.s32.totalorder %s14, 3
      %p187 = pnand %p185, %p186
      %p188 = pneg %p187
      // Predicated region
      $region9: #{tpu_custom_call.1} parent=5 // pred_check
        _
      $region10: #{tpu_custom_call.1} parent=5 // pred_check_branch
        %190 = sbr.rel (%p187) target = $region12
      $region11: #{tpu_custom_call.1} parent=5 // pred_region
        %s191 = ssub.s32 %s14, 1
        // Predicated region
        $region13: #{tpu_custom_call.1} parent=11 // pred_check
          %p192 = pneg %p78
        $region14: #{tpu_custom_call.1} parent=11 // pred_check_branch
          %194 = sbr.rel (%p192) target = $region16
        $region15: #{tpu_custom_call.1} parent=11 // pred_region
          %p195 = scmp.lt.s32.totalorder %s24, 0
          %s196 = scalar_select %p195, %s24, 0
          %s197 = smul.addr %s196, 8
          %s198 = scalar_lea.vmem %s1, %s197
        $region16: #{tpu_custom_call.1} parent=11 // pred_fallthru
          _
        // Predicated region
        $region17: #{tpu_custom_call.1} parent=11 // pred_check
          %p199 = pneg %p104
        $region18: #{tpu_custom_call.1} parent=11 // pred_check_branch
          %201 = sbr.rel (%p199) target = $region20
        $region19: #{tpu_custom_call.1} parent=11 // pred_region
          %p202 = scmp.lt.s32.totalorder %s24, 0
          %s203 = scalar_select %p202, %s24, 0
          %s204 = scalar_lea.vmem %s2, %s203
        $region20: #{tpu_custom_call.1} parent=11 // pred_fallthru
          _
        // Predicated region
        $region21: #{tpu_custom_call.1} parent=11 // pred_check
          %p205 = pneg %p130
        $region22: #{tpu_custom_call.1} parent=11 // pred_check_branch
          %207 = sbr.rel (%p205) target = $region24
        $region23: #{tpu_custom_call.1} parent=11 // pred_region
          %s208 = smul.u32 16, %s24
          %p209 = scmp.lt.s32.totalorder %s208, 15
          %s210 = scalar_select %p209, %s208, 15
          %s211 = smul.addr %s210, 8
          %s212 = scalar_lea.vmem %s3, %s211
          %s213 = smul.u32 16, %s24
        $region24: #{tpu_custom_call.1} parent=11 // pred_fallthru
          _
        // Predicated region
        $region25: #{tpu_custom_call.1} parent=11 // pred_check
          %p214 = pneg %p151
        $region26: #{tpu_custom_call.1} parent=11 // pred_check_branch
          %216 = sbr.rel (%p214) target = $region28
        $region27: #{tpu_custom_call.1} parent=11 // pred_region
          _
        $region28: #{tpu_custom_call.1} parent=11 // pred_fallthru
          _
      $region12: #{tpu_custom_call.1} parent=5 // pred_fallthru
        _
      %p217 = scmp.lt.s32.totalorder %s14, 2
      // Predicated region
      $region29: #{tpu_custom_call.1} parent=5 // pred_check
        %p218 = pneg %p217
      $region30: #{tpu_custom_call.1} parent=5 // pred_check_branch
        %220 = sbr.rel (%p218) target = $region32
      $region31: #{tpu_custom_call.1} parent=5 // pred_region
        // Predicated region
        $region33: #{tpu_custom_call.1} parent=31 // pred_check
          %p221 = pneg %p46
        $region34: #{tpu_custom_call.1} parent=31 // pred_check_branch
          %223 = sbr.rel (%p221) target = $region36
        $region35: #{tpu_custom_call.1} parent=31 // pred_region
          %p224 = scmp.lt.s32.totalorder %s21, 1
          %s225 = scalar_select %p224, %s21, 1
          %s226 = smul.addr %s225, 8
          %s227 = scalar_lea.vmem %s0, %s226
        $region36: #{tpu_custom_call.1} parent=31 // pred_fallthru
          _
      $region32: #{tpu_custom_call.1} parent=5 // pred_fallthru
        _
      %p228 = scmp.le.s32.totalorder 1, %s14
      %p229 = scmp.lt.s32.totalorder %s14, 3
      %p230 = pnand %p228, %p229
      %p231 = pneg %p230
      // Predicated region
      $region37: #{tpu_custom_call.1} parent=5 // pred_check
        _
      $region38: #{tpu_custom_call.1} parent=5 // pred_check_branch
        %233 = sbr.rel (%p230) target = $region40
      $region39: #{tpu_custom_call.1} parent=5 // pred_region
        %s234 = ssub.s32 %s14, 1
        %p235 = scmp.lt.s32.totalorder %s23, 1
        %s236 = scalar_select %p235, %s23, 1
        %s237 = smul.addr %s236, 8
        %s238 = scalar_lea.vmem %s0, %s237
        %p239 = pneg %p52
        %p240 = pneg %p49
        %p241 = scmp.lt.s32.totalorder %s24, 0
        %s242 = scalar_select %p241, %s24, 0
        %s243 = smul.addr %s242, 8
        %s244 = scalar_lea.vmem %s1, %s243
        %p245 = pneg %p78
        %p246 = pneg %p75
        %p247 = scmp.lt.s32.totalorder %s24, 0
        %s248 = scalar_select %p247, %s24, 0
        %s249 = scalar_lea.vmem %s2, %s248
        %p250 = pneg %p104
        %p251 = pneg %p101
        %s252 = smul.u32 16, %s24
        %p253 = scmp.lt.s32.totalorder %s252, 15
        %s254 = scalar_select %p253, %s252, 15
        %s255 = smul.addr %s254, 8
        %s256 = scalar_lea.vmem %s3, %s255
        %p257 = pneg %p130
        %p258 = pneg %p127
        %p259 = pneg %p151
        %p260 = pneg %p148
        %p261 = pneg %p177
        %p262 = pneg %p174
        %s263 = sand.u32 %s164, 1
        %s264 = scalar_lea.sflag [#allocation4], %s263
        %s265 = sand.u32 %s164, 1
        %s266 = smul.addr %s265, 8
        %s267 = scalar_lea.vmem [#allocation3], %s266
        %p268 = scmp.lt.s32.totalorder %s23, 1
        %s269 = scalar_select %p268, %s23, 1
        %s270 = smul.addr %s269, 8
        %s271 = scalar_lea.vmem %s0, %s270
        %p272 = scmp.lt.s32.totalorder %s24, 0
        %s273 = scalar_select %p272, %s24, 0
        %s274 = smul.addr %s273, 8
        %s275 = scalar_lea.vmem %s1, %s274
        %p276 = scmp.lt.s32.totalorder %s24, 0
        %s277 = scalar_select %p276, %s24, 0
        %s278 = scalar_lea.vmem %s2, %s277
        %s279 = smul.u32 16, %s24
        %p280 = scmp.lt.s32.totalorder %s279, 15
        %s281 = scalar_select %p280, %s279, 15
        %s282 = smul.addr %s281, 8
        %s283 = scalar_lea.vmem %s3, %s282
        %s284 = smul.u32 16, %s24
        %p285 = scmp.eq.s32.totalorder %s24, 0
        // Predicated region
        $region41: #{tpu_custom_call.1} parent=39 // pred_check
          %p286 = pneg %p285
        $region42: #{tpu_custom_call.1} parent=39 // pred_check_branch
          %288 = sbr.rel (%p286) target = $region44
        $region43: #{tpu_custom_call.1} parent=39 // pred_region
          %vm289 = vcmask 261120
          %290 = vst.msk [vmem:[#allocation2] sm:$0xff] %vm289, 0.0
        $region44: #{tpu_custom_call.1} parent=39 // pred_fallthru
          _
        %v291 = vld [vmem:[%s271] sm:$0xff]
        %v292 = vld [vmem:[%s275] sm:$0xff]
        %v293 = vld [vmem:[%s275 + $0x8] sm:$0xff]
        %v294 = vld [vmem:[%s275 + $0x10] sm:$0xff]
        %v295 = vld [vmem:[%s275 + $0x18] sm:$0xff]
        %vm296 = vcmask 261120
        %v298 = vsel %vm296, %v291, 0
        %300 = vmatprep.subr.mxu0 0.0
        %301 = vmatpush1.msra.mxu0 %v292
        %302 = vmatprep.subr.mxu0 0.0
        %303 = vmatpush1.msra.mxu0 %v293
        %304 = vmatprep.subr.mxu0 0.0
        %305 = vmatpush1.msra.mxu0 %v294
        %306 = vmatprep.subr.mxu0 0.0
        %307 = vmatpush1.msra.mxu0 %v295
        %308 = vmatprep.subr.mxu0 0.0
        %309 = vmatpush1.msra.mxu0 0.0
        %310 = vmatprep.subr.mxu0 0.0
        %311 = vmatpush1.msra.mxu0 0.0
        %312 = vmatprep.subr.mxu0 0.0
        %313 = vmatpush1.msra.mxu0 0.0
        %314 = vmatprep.subr.mxu0 0.0
        %315 = vmatpush1.msra.mxu0 0.0
        %316 = vmatprep.subr.mxu0 0.0
        %317 = vmatpush1.msra.mxu0 0.0
        %318 = vmatprep.subr.mxu0 0.0
        %319 = vmatpush1.msra.mxu0 0.0
        %320 = vmatprep.subr.mxu0 0.0
        %321 = vmatpush1.msra.mxu0 0.0
        %322 = vmatprep.subr.mxu0 0.0
        %323 = vmatpush1.msra.mxu0 0.0
        %324 = vmatprep.subr.mxu0 0.0
        %325 = vmatpush1.msra.mxu0 0.0
        %326 = vmatprep.subr.mxu0 0.0
        %327 = vmatpush1.msra.mxu0 0.0
        %328 = vmatprep.subr.mxu0 0.0
        %329 = vmatpush1.msra.mxu0 0.0
        %330 = vmatprep.subr.mxu0 0.0
        %331 = vmatpush1.msra.mxu0 0.0
        %332 = vmatprep.subr.mxu0 0.0
        %333 = vmatpush1.msra.mxu0 0.0
        %334 = vmatprep.subr.mxu0 0.0
        %335 = vmatpush1.msra.mxu0 0.0
        %336 = vmatprep.subr.mxu0 0.0
        %337 = vmatpush1.msra.mxu0 0.0
        %338 = vmatprep.subr.mxu0 0.0
        %339 = vmatpush1.msra.mxu0 0.0
        %340 = vmatprep.subr.mxu0 0.0
        %341 = vmatpush1.msra.mxu0 0.0
        %342 = vmatprep.subr.mxu0 0.0
        %343 = vmatpush1.msra.mxu0 0.0
        %344 = vmatprep.subr.mxu0 0.0
        %345 = vmatpush1.msra.mxu0 0.0
        %346 = vmatprep.subr.mxu0 0.0
        %347 = vmatpush1.msra.mxu0 0.0
        %348 = vmatprep.subr.mxu0 0.0
        %349 = vmatpush1.msra.mxu0 0.0
        %350 = vmatprep.subr.mxu0 0.0
        %351 = vmatpush1.msra.mxu0 0.0
        %352 = vmatprep.subr.mxu0 0.0
        %353 = vmatpush1.msra.mxu0 0.0
        %354 = vmatprep.subr.mxu0 0.0
        %355 = vmatpush1.msra.mxu0 0.0
        %356 = vmatprep.subr.mxu0 0.0
        %357 = vmatpush1.msra.mxu0 0.0
        %358 = vmatprep.subr.mxu0 0.0
        %359 = vmatpush1.msra.mxu0 0.0
        %360 = vmatprep.subr.mxu0 0.0
        %361 = vmatpush1.msra.mxu0 0.0
        %362 = vmatprep.subr.mxu0 0.0
        %363 = vmatpush1.msra.mxu0 0.0
        %364 = vmatprep.mubr.f32.mxu0 0.0
        %365 = vmatmul.mubr.f32.gmra.mrb[0].mxu0 %v298
        %v366 = vpop.f32.mrb[0].mxu0
        %v367 = vadd.f32 0.0, %v366
        %v368 = vpop.f32.mrb[0].mxu0
        %369 = vdwg.mxu0
        %v370 = vmul.f32 %v291, %v291
        %v371 = vsel %vm296, %v370, 0.0
        %372 = vadd.xlane.f32.xlu0 %v371
        %v373 = vpop.xlane.xlu0 %372
        %v374 = vmul.f32 %v373, 0.5
        %v375 = vsub.f32 %v367, %v374
        %v376 = vld [vmem:[%s278] sm:$0x1]
        %v378 = vlaneseq
        %v379 = vshrl.u32 %v378, 7
        %v380 = vsub.s32 0, %v379
        %v381 = vrot.slane %v376, %v380
        %v383 = vsub.f32 %v375, %v381
        %v384 = vmin.f32 %v383, 0.0
        %v385 = vmul.f32 %v384, 1.442695
        %v386 = vpow.pop %v385
        %v387 = vld [vmem:[#allocation2] sm:$0xff]
        %v388 = vld [vmem:[%s283] sm:$0xff]
        %v389 = vld [vmem:[%s283 + $0x8] sm:$0xff]
        %v390 = vld [vmem:[%s283 + $0x10] sm:$0xff]
        %v391 = vld [vmem:[%s283 + $0x18] sm:$0xff]
        %v392 = vld [vmem:[%s283 + $0x20] sm:$0xff]
        %v393 = vld [vmem:[%s283 + $0x28] sm:$0xff]
        %v394 = vld [vmem:[%s283 + $0x30] sm:$0xff]
        %v395 = vld [vmem:[%s283 + $0x38] sm:$0xff]
        %v396 = vld [vmem:[%s283 + $0x40] sm:$0xff]
        %v397 = vld [vmem:[%s283 + $0x48] sm:$0xff]
        %v398 = vld [vmem:[%s283 + $0x50] sm:$0xff]
        %v399 = vld [vmem:[%s283 + $0x58] sm:$0xff]
        %v400 = vld [vmem:[%s283 + $0x60] sm:$0xff]
        %v401 = vld [vmem:[%s283 + $0x68] sm:$0xff]
        %v402 = vld [vmem:[%s283 + $0x70] sm:$0xff]
        %v403 = vld [vmem:[%s283 + $0x78] sm:$0xff]
        %404 = vmatprep.subr.mxu0 0.0
        %405 = vmatpush1.msra.mxu0 %v388
        %406 = vmatprep.subr.mxu0 0.0
        %407 = vmatpush1.msra.mxu0 %v389
        %408 = vmatprep.subr.mxu0 0.0
        %409 = vmatpush1.msra.mxu0 %v390
        %410 = vmatprep.subr.mxu0 0.0
        %411 = vmatpush1.msra.mxu0 %v391
        %412 = vmatprep.subr.mxu0 0.0
        %413 = vmatpush1.msra.mxu0 %v392
        %414 = vmatprep.subr.mxu0 0.0
        %415 = vmatpush1.msra.mxu0 %v393
        %416 = vmatprep.subr.mxu0 0.0
        %417 = vmatpush1.msra.mxu0 %v394
        %418 = vmatprep.subr.mxu0 0.0
        %419 = vmatpush1.msra.mxu0 %v395
        %420 = vmatprep.subr.mxu0 0.0
        %421 = vmatpush1.msra.mxu0 %v396
        %422 = vmatprep.subr.mxu0 0.0
        %423 = vmatpush1.msra.mxu0 %v397
        %424 = vmatprep.subr.mxu0 0.0
        %425 = vmatpush1.msra.mxu0 %v398
        %426 = vmatprep.subr.mxu0 0.0
        %427 = vmatpush1.msra.mxu0 %v399
        %428 = vmatprep.subr.mxu0 0.0
        %429 = vmatpush1.msra.mxu0 %v400
        %430 = vmatprep.subr.mxu0 0.0
        %431 = vmatpush1.msra.mxu0 %v401
        %432 = vmatprep.subr.mxu0 0.0
        %433 = vmatpush1.msra.mxu0 %v402
        %434 = vmatprep.subr.mxu0 0.0
        %435 = vmatpush1.msra.mxu0 %v403
        %436 = vmatprep.subr.mxu0 0.0
        %437 = vmatpush1.msra.mxu0 0.0
        %438 = vmatprep.subr.mxu0 0.0
        %439 = vmatpush1.msra.mxu0 0.0
        %440 = vmatprep.subr.mxu0 0.0
        %441 = vmatpush1.msra.mxu0 0.0
        %442 = vmatprep.subr.mxu0 0.0
        %443 = vmatpush1.msra.mxu0 0.0
        %444 = vmatprep.subr.mxu0 0.0
        %445 = vmatpush1.msra.mxu0 0.0
        %446 = vmatprep.subr.mxu0 0.0
        %447 = vmatpush1.msra.mxu0 0.0
        %448 = vmatprep.subr.mxu0 0.0
        %449 = vmatpush1.msra.mxu0 0.0
        %450 = vmatprep.subr.mxu0 0.0
        %451 = vmatpush1.msra.mxu0 0.0
        %452 = vmatprep.subr.mxu0 0.0
        %453 = vmatpush1.msra.mxu0 0.0
        %454 = vmatprep.subr.mxu0 0.0
        %455 = vmatpush1.msra.mxu0 0.0
        %456 = vmatprep.subr.mxu0 0.0
        %457 = vmatpush1.msra.mxu0 0.0
        %458 = vmatprep.subr.mxu0 0.0
        %459 = vmatpush1.msra.mxu0 0.0
        %460 = vmatprep.subr.mxu0 0.0
        %461 = vmatpush1.msra.mxu0 0.0
        %462 = vmatprep.subr.mxu0 0.0
        %463 = vmatpush1.msra.mxu0 0.0
        %464 = vmatprep.subr.mxu0 0.0
        %465 = vmatpush1.msra.mxu0 0.0
        %466 = vmatprep.subr.mxu0 0.0
        %467 = vmatpush1.msra.mxu0 0.0
        %468 = vmatprep.mubr.f32.mxu0 0.0
        %469 = vmatmul.mubr.f32.gmra.mrb[0].mxu0 %v386
        %v470 = vpop.f32.mrb[0].mxu0
        %v471 = vadd.f32 0.0, %v470
        %v472 = vpop.f32.mrb[0].mxu0
        %473 = vdwg.mxu0
        %v474 = vadd.f32 %v387, %v471
        %475 = vst.msk [vmem:[#allocation2] sm:$0xff] %vm296, %v474
        // Predicated region
        $region45: #{tpu_custom_call.1} parent=39 // pred_check
          %p476 = pneg %p285
        $region46: #{tpu_custom_call.1} parent=39 // pred_check_branch
          %478 = sbr.rel (%p476) target = $region48
        $region47: #{tpu_custom_call.1} parent=39 // pred_region
          %v479 = vld [vmem:[#allocation2] sm:$0xff]
          %v480 = vld [vmem:[%s4] sm:$0x1]
          %v482 = vlaneseq
          %v483 = vshrl.u32 %v482, 7
          %v484 = vsub.s32 0, %v483
          %v485 = vrot.slane %v480, %v484
          %v487 = vadd.f32 %v479, %v485
          %488 = vst.msk [vmem:[%s267] sm:$0xff] %vm296, %v487
        $region48: #{tpu_custom_call.1} parent=39 // pred_fallthru
          _
        %s489 = sand.u32 %s164, 1
        %s490 = scalar_lea.sflag [#allocation4], %s489
        %s491 = sand.u32 %s164, 1
        %s492 = smul.addr %s491, 8
        %s493 = scalar_lea.vmem [#allocation3], %s492
        // Predicated region
        $region49: #{tpu_custom_call.1} parent=39 // pred_check
          %p494 = pneg %p174
        $region50: #{tpu_custom_call.1} parent=39 // pred_check_branch
          %496 = sbr.rel (%p494) target = $region52
        $region51: #{tpu_custom_call.1} parent=39 // pred_region
          %s498 = ssub.s32 128, 128
          %499 = vsyncadd %s490, %s498
          %s500 = smul.addr %s23, 128
          %s501 = scalar_lea.hbm %s5, %s500
          %s503 = sshll.u32 %s493, 4
          %s504 = int_to_ptr.vmem [resolvable:$true] %s503
          %506 = dma.vmem_to_hbm [thread:$0]  %s504, 128, %s501, %s490
        $region52: #{tpu_custom_call.1} parent=39 // pred_fallthru
          _
      $region40: #{tpu_custom_call.1} parent=5 // pred_fallthru
        _
      %p507 = scmp.le.s32.totalorder 2, %s14
      // Predicated region
      $region53: #{tpu_custom_call.1} parent=5 // pred_check
        %p508 = pneg %p507
      $region54: #{tpu_custom_call.1} parent=5 // pred_check_branch
        %510 = sbr.rel (%p508) target = $region56
      $region55: #{tpu_custom_call.1} parent=5 // pred_region
        %s511 = ssub.s32 %s14, 2
        // Predicated region
        $region57: #{tpu_custom_call.1} parent=55 // pred_check
          %p512 = pneg %p180
        $region58: #{tpu_custom_call.1} parent=55 // pred_check_branch
          %514 = sbr.rel (%p512) target = $region60
        $region59: #{tpu_custom_call.1} parent=55 // pred_region
          %s515 = sand.u32 %s165, 1
          %s516 = scalar_lea.sflag [#allocation4], %s515
          %s517 = sand.u32 %s165, 1
          %s518 = smul.addr %s517, 8
          %s519 = scalar_lea.vmem [#allocation3], %s518
          %520 = dma.done %s516, 128
        $region60: #{tpu_custom_call.1} parent=55 // pred_fallthru
          _
      $region56: #{tpu_custom_call.1} parent=5 // pred_fallthru
        _
    $region6: #{tpu_custom_call.1} parent=1 // loop_footer
      %s18 = sadd.s32 1, %s14
    $region7: #{tpu_custom_call.1} parent=1 // loop_footer_branch
      %13 = sbr.rel target = $region3
    $region8: #{tpu_custom_call.1} parent=1 // loop_exit
      _
    %521 = vsyncpa [#allocation4], 1
    %s522 = scalar_lea.sflag [#allocation4], 1
    %523 = vsyncpa %s522, 1

</llo_original>
